<compile_context>
chip_gen: v7x
topology: tpu7x:2x2x1
jax: 0.10.0
libtpu: 0.0.40
codegen_flags: <defaults>
</compile_context>

<pallas_src>
import functools
import math

import jax
import jax.numpy as jnp
from jax.experimental import pallas as pl
from jax.experimental.pallas import tpu as pltpu


def _wavelet_conv_kernel(*refs, m, K, left, T_tile, halo, t_win, has_halo):
    # has_halo=True : refs = (xm, xl, xr, w, o)
    # has_halo=False: refs = (xm, w, o)
    if has_halo:
        xm_ref, xl_ref, xr_ref, w_ref, o_ref = refs
    else:
        xm_ref, w_ref, o_ref = refs

    w = w_ref[...]                       # (C_TILE, K)
    xm = xm_ref[0]                       # (C_TILE_IN, T_tile)
    c_in_tile = xm.shape[0]
    dtype = xm.dtype

    if has_halo:
        t_idx = pl.program_id(2)
        n_t = pl.num_programs(2)
        # Neighbour blocks are clamped in the index_map; zero-substitute at the array edges
        # (this implements the zero 'same' padding without any HBM pad pass).  jnp.where (not
        # a 0/1 multiply) so garbage in the clamped block can never leak NaN/Inf.
        xl = jnp.where(t_idx > 0, xl_ref[0], jnp.zeros_like(xl_ref[0]))          # (C_TILE_IN, halo)
        xr = jnp.where(t_idx < n_t - 1, xr_ref[0], jnp.zeros_like(xr_ref[0]))    # (C_TILE_IN, halo)
    else:
        xl = jnp.zeros((c_in_tile, halo), dtype)
        xr = jnp.zeros((c_in_tile, t_win - halo - T_tile), dtype)

    # Window position p  <->  global time (t0 - halo + p); width t_win is a multiple of 128.
    window = jnp.concatenate([xl, xm, xr], axis=1)       # (C_TILE_IN, t_win)

    # Group (depthwise-multiplier) expansion in VMEM: output row r uses input row r // m.
    # Sublane broadcast per input channel (cheap splat); done once per grid step.
    if m > 1:
        pieces = [jnp.broadcast_to(window[ci:ci + 1, :], (m, t_win))
                  for ci in range(c_in_tile)]
        window = jnp.concatenate(pieces, axis=0)         # (C_TILE, t_win)

    # K-tap MAC on the VPU; per-tap lane shift via XLU roll (separate issue slot from the VPU).
    # Shift amounts are chosen so no wraparound touches live data -> zero padding is exact.
    acc = None
    for k in range(K):
        d = k - left                                     # tap offset relative to output position
        shift = (-(halo + d)) % t_win
        if shift == 0:
            shifted = window[:, :T_tile]
        else:
            shifted = pltpu.roll(window, shift=shift, axis=1)[:, :T_tile]
        term = w[:, k:k + 1] * shifted                   # broadcast tap weight over lanes
        acc = term if acc is None else acc + term

    o_ref[0] = acc.astype(o_ref.dtype)


def _pick_time_tiling(T, HW):
    """Largest lane-dense time tile that divides T and is a multiple of the halo width."""
    for cand in (1024, 512, 256, 128):
        if cand % HW == 0 and T % cand == 0 and T // cand >= 2:
            return cand, T // cand
    return T, 1      # single tile: whole row processed at once (no halo blocks needed)


def wavelet_conv1d_pallas(x, filt, in_channels):
    """F.conv1d(pad_same(x), filt[:, None, :], groups=in_channels, padding='valid')."""
    B, C_in, T = x.shape
    C_out, K = filt.shape
    assert C_in == in_channels
    assert C_out % C_in == 0
    m = C_out // C_in

    # TemporalPad(padding='same', padding_mode='zeros'):
    # TODO(synk): TemporalPad source not provided; assume standard 'same' split
    # left=(K-1)//2, right=K//2 (symmetric for odd K), zero padding.
    left = (K - 1) // 2
    right = K - 1 - left

    # ---- channel tiling: output block of C_TILE channels reads C_TILE_IN = C_TILE//m inputs.
    C_TILE = C_out
    if C_out > 256:
        for c in (256, 128, 64):
            if C_out % c == 0 and c % m == 0 and ((c // m) % 8 == 0 or (c // m) == C_in):
                C_TILE = c
                break
    C_TILE_IN = C_TILE // m
    n_c = C_out // C_TILE

    # ---- time tiling: lane-dense tiles (sized to stay well under v7x's 64 MiB VMEM even
    # double-buffered); halo comes from 128-aligned neighbour blocks of the same array.
    HW = max(128, ((max(left, right) + 127) // 128) * 128)    # halo block width (>= K//2)
    T_TILE, n_t = _pick_time_tiling(T, HW)
    has_halo = n_t > 1
    T_WIN = HW + ((T_TILE + 127) // 128) * 128 + HW           # multiple of 128

    kernel = functools.partial(
        _wavelet_conv_kernel, m=m, K=K, left=left,
        T_tile=T_TILE, halo=HW, t_win=T_WIN, has_halo=has_halo)

    # Main x block: group mapping via block granularity (channel block index c covers output
    # channels [c*C_TILE, ...) and input channels [c*C_TILE_IN, ...)).
    in_specs = [pl.BlockSpec((1, C_TILE_IN, T_TILE), lambda b, c, t: (b, c, t))]
    operands = [x]
    if has_halo:
        R = T_TILE // HW
        n_hw = T // HW
        # Left / right halo: the HW lanes just before / after the current time tile
        # (clamped at the array edges; the kernel zeroes them there).
        in_specs.append(pl.BlockSpec(
            (1, C_TILE_IN, HW),
            lambda b, c, t: (b, c, jnp.maximum(t * R - 1, 0))))
        in_specs.append(pl.BlockSpec(
            (1, C_TILE_IN, HW),
            lambda b, c, t: (b, c, jnp.minimum((t + 1) * R, n_hw - 1))))
        operands += [x, x]
    in_specs.append(pl.BlockSpec((C_TILE, K), lambda b, c, t: (c, 0)))
    operands.append(filt)

    return pl.pallas_call(
        kernel,
        out_shape=jax.ShapeDtypeStruct((B, C_out, T), x.dtype),
        grid_spec=pltpu.PrefetchScalarGridSpec(
            num_scalar_prefetch=0,
            grid=(B, n_c, n_t),
            in_specs=in_specs,
            out_specs=pl.BlockSpec((1, C_TILE, T_TILE), lambda b, c, t: (b, c, t)),
        ),
        compiler_params=pltpu.CompilerParams(
            dimension_semantics=("parallel", "parallel", "parallel")),
    )(*operands)


def build_wavelet_filters(coef_freq, coef_bandwidth, kernel_size, srate,
                          margin_frequency=0.3, margin_bandwidth=0.05):
    """TemporalFilter._create_frequencies + WaveletLayer1d._create_filters."""
    freq = margin_frequency + jax.nn.softplus(coef_freq)                        # (C_out,)
    bandwidth = jax.nn.sigmoid(coef_bandwidth) * (1.0 - 2.0 * margin_bandwidth) + margin_bandwidth
    bandwidth = bandwidth * freq

    # _scale buffer: arange(-K//2 + 1, K//2 + 1) / srate   (Python floor-div semantics)
    scale = jnp.arange((-kernel_size) // 2 + 1, kernel_size // 2 + 1,
                       dtype=jnp.float32) / float(srate)                        # (K,)

    f = freq[:, None]                                                           # (C_out, 1)
    bw = bandwidth[:, None]
    sigma2 = 2.0 * math.log(2.0) / (bw * math.pi) ** 2
    amp = (2.0 * math.pi * sigma2) ** (-0.5) / (float(srate) / 2.0)
    filt = amp * jnp.cos(2.0 * math.pi * f * scale[None, :])
    filt = filt * jnp.exp(-(scale[None, :] ** 2) / (2.0 * sigma2))              # (C_out, K)
    return filt.astype(jnp.float32)


def init_params(out_channels, fmin_init, fmax_init, key):
    """Deterministic stand-in for the torch.Generator-based parameter init."""
    kf, kb = jax.random.split(key)
    coef_freq = fmin_init + jax.random.uniform(kf, (out_channels,), jnp.float32) * (fmax_init - fmin_init)
    u = jax.random.uniform(kb, (out_channels,), jnp.float32) * 0.95 + 0.025
    coef_bandwidth = jnp.log(u / (1.0 - u))
    return coef_freq, coef_bandwidth


def _reference_conv(x, filt, C_in, K):
    """Pure-JAX reference (XLA grouped conv = cross-correlation, same as F.conv1d)."""
    left = (K - 1) // 2
    right = K - 1 - left
    return jax.lax.conv_general_dilated(
        x, filt[:, None, :], window_strides=(1,), padding=[(left, right)],
        feature_group_count=C_in, dimension_numbers=("NCH", "OIH", "NCH"),
        precision=jax.lax.Precision.HIGHEST)


def _run_case(B, C_in, C_out, T, K, srate, fmin_init, fmax_init, key):
    kx, kp = jax.random.split(key)
    x = jax.random.normal(kx, (B, C_in, T), dtype=jnp.float32)
    coef_freq, coef_bandwidth = init_params(C_out, fmin_init, fmax_init, kp)
    filt = build_wavelet_filters(coef_freq, coef_bandwidth, K, srate)

    y = wavelet_conv1d_pallas(x, filt, C_in)
    jax.block_until_ready(y)

    y_ref = _reference_conv(x, filt, C_in, K)
    assert y.shape == (B, C_out, T)
    assert jnp.allclose(y, y_ref, atol=3e-5, rtol=1e-5), (
        f"mismatch vs reference conv (B={B}, C_in={C_in}, C_out={C_out}, T={T}, K={K})")
    return y


if __name__ == "__main__":
    key = jax.random.PRNGKey(0)
    k1, k2, k3 = jax.random.split(key, 3)
    srate, fmin_init, fmax_init = 128.0, 1.0, 40.0

    # Case 1: tiny single-tile path (no halo), multiplier m = 2.
    _run_case(B=2, C_in=4, C_out=8, T=16, K=9, srate=srate,
              fmin_init=fmin_init, fmax_init=fmax_init, key=k1)

    # Case 2: multi-tile time axis -> exercises the clamped-halo BlockSpecs (T_TILE=256, n_t=2).
    _run_case(B=2, C_in=4, C_out=8, T=512, K=9, srate=srate,
              fmin_init=fmin_init, fmax_init=fmax_init, key=k2)

    # Case 3: depth multiplier m = 1 (no group expansion in-kernel).
    _run_case(B=2, C_in=4, C_out=4, T=512, K=9, srate=srate,
              fmin_init=fmin_init, fmax_init=fmax_init, key=k3)

    print("KERNEL_OK")
</pallas_src>

<mosaic_0001>
module attributes {stable_mosaic.version = 11 : i64} {
  func.func @_wavelet_conv_kernel(%arg0: i32, %arg1: i32, %arg2: i32, %arg3: memref<1x4x16xf32, #tpu.memory_space<vmem>>, %arg4: memref<8x9xf32, #tpu.memory_space<vmem>>, %arg5: memref<1x8x16xf32, #tpu.memory_space<vmem>>) attributes {dimension_semantics = [#tpu.dimension_semantics<parallel>, #tpu.dimension_semantics<parallel>, #tpu.dimension_semantics<parallel>], iteration_bounds = array<i64: 2, 1, 1>, scalar_prefetch = 0 : i64, scratch_operands = 0 : i64, tpu.core_type = #tpu.core_type<tc>, window_params = [{transform_indices = @transform_0, window_bounds = array<i64: 1, 4, 16>}, {transform_indices = @transform_1, window_bounds = array<i64: 8, 9>}, {transform_indices = @transform_2, window_bounds = array<i64: 1, 8, 16>}]} {
    %c0 = arith.constant 0 : index
    %c0_0 = arith.constant 0 : index
    %0 = vector.load %arg4[%c0, %c0_0] : memref<8x9xf32, #tpu.memory_space<vmem>>, vector<8x9xf32>
    %c0_1 = arith.constant 0 : index
    %c0_2 = arith.constant 0 : index
    %c0_3 = arith.constant 0 : index
    %1 = vector.load %arg3[%c0_1, %c0_2, %c0_3] : memref<1x4x16xf32, #tpu.memory_space<vmem>>, vector<1x4x16xf32>
    %2 = vector.shape_cast %1 : vector<1x4x16xf32> to vector<4x16xf32>
    %cst = arith.constant 0.000000e+00 : f32
    %3 = vector.broadcast %cst : f32 to vector<4x128xf32>
    %cst_4 = arith.constant 0.000000e+00 : f32
    %4 = vector.broadcast %cst_4 : f32 to vector<4x240xf32>
    %5 = tpu.concatenate %3, %2, %4 in 1 : vector<4x128xf32>, vector<4x16xf32>, vector<4x240xf32> -> vector<4x384xf32>
    %6 = vector.extract_strided_slice %5 {offsets = [0, 0], sizes = [1, 384], strides = [1, 1]} : vector<4x384xf32> to vector<1x384xf32>
    %7 = vector.shape_cast %6 : vector<1x384xf32> to vector<1x384xf32>
    %8 = vector.broadcast %7 : vector<1x384xf32> to vector<2x384xf32>
    %9 = vector.extract_strided_slice %5 {offsets = [1, 0], sizes = [1, 384], strides = [1, 1]} : vector<4x384xf32> to vector<1x384xf32>
    %10 = vector.shape_cast %9 : vector<1x384xf32> to vector<1x384xf32>
    %11 = vector.broadcast %10 : vector<1x384xf32> to vector<2x384xf32>
    %12 = vector.extract_strided_slice %5 {offsets = [2, 0], sizes = [1, 384], strides = [1, 1]} : vector<4x384xf32> to vector<1x384xf32>
    %13 = vector.shape_cast %12 : vector<1x384xf32> to vector<1x384xf32>
    %14 = vector.broadcast %13 : vector<1x384xf32> to vector<2x384xf32>
    %15 = vector.extract_strided_slice %5 {offsets = [3, 0], sizes = [1, 384], strides = [1, 1]} : vector<4x384xf32> to vector<1x384xf32>
    %16 = vector.shape_cast %15 : vector<1x384xf32> to vector<1x384xf32>
    %17 = vector.broadcast %16 : vector<1x384xf32> to vector<2x384xf32>
    %18 = tpu.concatenate %8, %11, %14, %17 in 0 : vector<2x384xf32>, vector<2x384xf32>, vector<2x384xf32>, vector<2x384xf32> -> vector<8x384xf32>
    %c260_i32 = arith.constant 260 : i32
    %19 = tpu.dynamic_rotate %18 by %c260_i32 dim 1 : vector<8x384xf32>, i32 -> vector<8x384xf32>
    %20 = vector.extract_strided_slice %19 {offsets = [0, 0], sizes = [8, 16], strides = [1, 1]} : vector<8x384xf32> to vector<8x16xf32>
    %21 = vector.extract_strided_slice %0 {offsets = [0, 0], sizes = [8, 1], strides = [1, 1]} : vector<8x9xf32> to vector<8x1xf32>
    %22 = vector.broadcast %21 : vector<8x1xf32> to vector<8x16xf32>
    %23 = arith.mulf %22, %20 : vector<8x16xf32>
    %c259_i32 = arith.constant 259 : i32
    %24 = tpu.dynamic_rotate %18 by %c259_i32 dim 1 : vector<8x384xf32>, i32 -> vector<8x384xf32>
    %25 = vector.extract_strided_slice %24 {offsets = [0, 0], sizes = [8, 16], strides = [1, 1]} : vector<8x384xf32> to vector<8x16xf32>
    %26 = vector.extract_strided_slice %0 {offsets = [0, 1], sizes = [8, 1], strides = [1, 1]} : vector<8x9xf32> to vector<8x1xf32>
    %27 = vector.broadcast %26 : vector<8x1xf32> to vector<8x16xf32>
    %28 = arith.mulf %27, %25 : vector<8x16xf32>
    %29 = arith.addf %23, %28 : vector<8x16xf32>
    %c258_i32 = arith.constant 258 : i32
    %30 = tpu.dynamic_rotate %18 by %c258_i32 dim 1 : vector<8x384xf32>, i32 -> vector<8x384xf32>
    %31 = vector.extract_strided_slice %30 {offsets = [0, 0], sizes = [8, 16], strides = [1, 1]} : vector<8x384xf32> to vector<8x16xf32>
    %32 = vector.extract_strided_slice %0 {offsets = [0, 2], sizes = [8, 1], strides = [1, 1]} : vector<8x9xf32> to vector<8x1xf32>
    %33 = vector.broadcast %32 : vector<8x1xf32> to vector<8x16xf32>
    %34 = arith.mulf %33, %31 : vector<8x16xf32>
    %35 = arith.addf %29, %34 : vector<8x16xf32>
    %c257_i32 = arith.constant 257 : i32
    %36 = tpu.dynamic_rotate %18 by %c257_i32 dim 1 : vector<8x384xf32>, i32 -> vector<8x384xf32>
    %37 = vector.extract_strided_slice %36 {offsets = [0, 0], sizes = [8, 16], strides = [1, 1]} : vector<8x384xf32> to vector<8x16xf32>
    %38 = vector.extract_strided_slice %0 {offsets = [0, 3], sizes = [8, 1], strides = [1, 1]} : vector<8x9xf32> to vector<8x1xf32>
    %39 = vector.broadcast %38 : vector<8x1xf32> to vector<8x16xf32>
    %40 = arith.mulf %39, %37 : vector<8x16xf32>
    %41 = arith.addf %35, %40 : vector<8x16xf32>
    %c256_i32 = arith.constant 256 : i32
    %42 = tpu.dynamic_rotate %18 by %c256_i32 dim 1 : vector<8x384xf32>, i32 -> vector<8x384xf32>
    %43 = vector.extract_strided_slice %42 {offsets = [0, 0], sizes = [8, 16], strides = [1, 1]} : vector<8x384xf32> to vector<8x16xf32>
    %44 = vector.extract_strided_slice %0 {offsets = [0, 4], sizes = [8, 1], strides = [1, 1]} : vector<8x9xf32> to vector<8x1xf32>
    %45 = vector.broadcast %44 : vector<8x1xf32> to vector<8x16xf32>
    %46 = arith.mulf %45, %43 : vector<8x16xf32>
    %47 = arith.addf %41, %46 : vector<8x16xf32>
    %c255_i32 = arith.constant 255 : i32
    %48 = tpu.dynamic_rotate %18 by %c255_i32 dim 1 : vector<8x384xf32>, i32 -> vector<8x384xf32>
    %49 = vector.extract_strided_slice %48 {offsets = [0, 0], sizes = [8, 16], strides = [1, 1]} : vector<8x384xf32> to vector<8x16xf32>
    %50 = vector.extract_strided_slice %0 {offsets = [0, 5], sizes = [8, 1], strides = [1, 1]} : vector<8x9xf32> to vector<8x1xf32>
    %51 = vector.broadcast %50 : vector<8x1xf32> to vector<8x16xf32>
    %52 = arith.mulf %51, %49 : vector<8x16xf32>
    %53 = arith.addf %47, %52 : vector<8x16xf32>
    %c254_i32 = arith.constant 254 : i32
    %54 = tpu.dynamic_rotate %18 by %c254_i32 dim 1 : vector<8x384xf32>, i32 -> vector<8x384xf32>
    %55 = vector.extract_strided_slice %54 {offsets = [0, 0], sizes = [8, 16], strides = [1, 1]} : vector<8x384xf32> to vector<8x16xf32>
    %56 = vector.extract_strided_slice %0 {offsets = [0, 6], sizes = [8, 1], strides = [1, 1]} : vector<8x9xf32> to vector<8x1xf32>
    %57 = vector.broadcast %56 : vector<8x1xf32> to vector<8x16xf32>
    %58 = arith.mulf %57, %55 : vector<8x16xf32>
    %59 = arith.addf %53, %58 : vector<8x16xf32>
    %c253_i32 = arith.constant 253 : i32
    %60 = tpu.dynamic_rotate %18 by %c253_i32 dim 1 : vector<8x384xf32>, i32 -> vector<8x384xf32>
    %61 = vector.extract_strided_slice %60 {offsets = [0, 0], sizes = [8, 16], strides = [1, 1]} : vector<8x384xf32> to vector<8x16xf32>
    %62 = vector.extract_strided_slice %0 {offsets = [0, 7], sizes = [8, 1], strides = [1, 1]} : vector<8x9xf32> to vector<8x1xf32>
    %63 = vector.broadcast %62 : vector<8x1xf32> to vector<8x16xf32>
    %64 = arith.mulf %63, %61 : vector<8x16xf32>
    %65 = arith.addf %59, %64 : vector<8x16xf32>
    %c252_i32 = arith.constant 252 : i32
    %66 = tpu.dynamic_rotate %18 by %c252_i32 dim 1 : vector<8x384xf32>, i32 -> vector<8x384xf32>
    %67 = vector.extract_strided_slice %66 {offsets = [0, 0], sizes = [8, 16], strides = [1, 1]} : vector<8x384xf32> to vector<8x16xf32>
    %68 = vector.extract_strided_slice %0 {offsets = [0, 8], sizes = [8, 1], strides = [1, 1]} : vector<8x9xf32> to vector<8x1xf32>
    %69 = vector.broadcast %68 : vector<8x1xf32> to vector<8x16xf32>
    %70 = arith.mulf %69, %67 : vector<8x16xf32>
    %71 = arith.addf %65, %70 : vector<8x16xf32>
    %c0_5 = arith.constant 0 : index
    %c0_6 = arith.constant 0 : index
    %c0_7 = arith.constant 0 : index
    %72 = vector.load %arg5[%c0_5, %c0_6, %c0_7] : memref<1x8x16xf32, #tpu.memory_space<vmem>>, vector<1x8x16xf32>
    %73 = vector.shape_cast %72 : vector<1x8x16xf32> to vector<8x16xf32>
    %74 = vector.shape_cast %71 : vector<8x16xf32> to vector<1x8x16xf32>
    tpu.vector_store %arg5[%c0_5, %c0_6, %c0_7], %74 {strides = array<i32>} : memref<1x8x16xf32, #tpu.memory_space<vmem>>, vector<1x8x16xf32>,
    return
  }
  func.func @transform_0(%arg0: i32, %arg1: i32, %arg2: i32) -> (i32, i32, i32) {
    %c0_i32 = arith.constant 0 : i32
    return %arg0, %arg1, %arg2 : i32, i32, i32
  }
  func.func @transform_1(%arg0: i32, %arg1: i32, %arg2: i32) -> (i32, i32) {
    %c0_i32 = arith.constant 0 : i32
    %c0_i32_0 = arith.constant 0 : i32
    return %arg1, %c0_i32 : i32, i32
  }
  func.func @transform_2(%arg0: i32, %arg1: i32, %arg2: i32) -> (i32, i32, i32) {
    %c0_i32 = arith.constant 0 : i32
    return %arg0, %arg1, %arg2 : i32, i32, i32
  }
}

</mosaic_0001>

<llo_original>
// kernel: tpu_custom_call.1
$region0: #{tpu_custom_call.1}
  #allocation0 [shape = 'u32[]', space=smem, size = 0x4, offset = 0x4, fixed_abs, tag = 'smem constant byte address 0x4 - core index']
  #allocation1 [shape = 'u32[144,128]{1,0:T(1,128)}', space=vmem, size = 0x12000, scoped, tag = 'internal scratch']
  %s0 = inlined_call_operand.hbm [shape: f32[2,4,16], index: 0, kind: input, shape index: {}]
  %s1 = inlined_call_operand.hbm [shape: f32[8,9], index: 1, kind: input, shape index: {}]
  %s2 = inlined_call_operand.hbm [shape: f32[2,8,16], index: 2, kind: output, shape index: {}]
  %s3 = sld [smem:[#allocation0]]
  $region49: #{tpu_custom_call.1} parent=0
    _
  %s5 = ssub.s32 1, %s3
  %s6 = scalar_select 0, %s5, %s3
  $region1: #{tpu_custom_call.1} parent=0
    #allocation2 [shape = 'u8[4096]{0}', space=vmem, size = 0x1000, scoped, tag = 'input window, operand 0']
    #allocation3 [shape = 's32[2]{0}', space=sflag, size = 0x8, scoped, tag = 'scoped memory for tpu_custom_call.1']
    #allocation4 [shape = 's32[2]{0}', space=sflag, size = 0x8, scoped, tag = 'scoped memory for tpu_custom_call.1']
    #allocation5 [shape = 'u8[4096]{0}', space=vmem, size = 0x1000, scoped, tag = 'input window, operand 1, single buffered']
    #allocation6 [shape = 's32[1]{0}', space=sflag, size = 0x4, scoped, tag = 'scoped memory for tpu_custom_call.1']
    #allocation7 [shape = 'u8[8192]{0}', space=vmem, size = 0x2000, scoped, tag = 'output window, operand 0']
    %7 = vsyncpa [#allocation3], 0
    %s8 = scalar_lea.sflag [#allocation3], 1
    %9 = vsyncpa %s8, 0
    %10 = vsyncpa [#allocation6], 0
    %11 = vsyncpa [#allocation4], 0
    %s12 = scalar_lea.sflag [#allocation4], 1
    %13 = vsyncpa %s12, 0
    loop: start=0, step=1, limit=4
    $region2: #{tpu_custom_call.1} parent=1 // loop_pre_header
      _
    $region3: #{tpu_custom_call.1} parent=1 // loop_header
      %s15 = sphi 0, %s19
      %p16 = scmp.ge.s32.totalorder %s15, 4
      %s22 = sphi 0, %s41
      %s23 = sphi 0, %s37
      %s24 = sphi 0, %s33
      %s25 = sphi 0, %s22
      %s26 = sphi 0, %s23
      %s27 = sphi 0, %s24
      %s28 = sphi 0, %s25
      %s29 = sphi 0, %s26
      %s30 = sphi 0, %s27
      %s48 = sphi 0, %s50
      %s51 = sphi 0, %s48
      %s52 = sphi 0, %s51
      %s68 = sphi 0, %s52
      %s74 = sphi 0, %s76
      %s77 = sphi 0, %s74
      %s78 = sphi 0, %s77
      %s94 = sphi 0, %s78
      %s104 = sphi 0, %s106
      %s107 = sphi 0, %s104
      %s108 = sphi 0, %s107
      %s124 = sphi 0, %s108
    $region4: #{tpu_custom_call.1} parent=1 // loop_header_branch
      %18 = sbr.rel (%p16) target = $region8
    $region5: #{tpu_custom_call.1} parent=1 // loop_body
      %s20 = ssub.s32 %s15, 1
      %s21 = ssub.s32 %s15, 2
      %s31 = sadd.s32 1, %s24
      %p32 = scmp.ge.s32.totalorder %s31, 1
      %s33 = scalar_select %p32, 0, %s31
      %s34 = sadd.s32 1, %s23
      %s35 = scalar_select %p32, %s34, %s23
      %p36 = scmp.ge.s32.totalorder %s35, 1
      %s37 = scalar_select %p36, 0, %s35
      %s38 = sadd.s32 1, %s22
      %s39 = scalar_select %p36, %s38, %s22
      %p40 = scmp.ge.s32.totalorder %s39, 2
      %s41 = scalar_select %p40, 0, %s39
      %s42 = ssub.s32 %s22, %s41
      %s43 = ssub.s32 %s23, %s37
      %s44 = sor.u32 %s42, %s43
      %s45 = ssub.s32 %s24, %s33
      %s46 = sor.u32 %s44, %s45
      %p47 = scmp.eq.s32.totalorder %s46, 0
      %s49 = sadd.s32 %s48, 1
      %s50 = scalar_select %p47, %s48, %s49
      %p53 = pneg %p47
      %p54 = scmp.eq.s32.totalorder %s15, 1
      %p55 = por %p53, %p54
      %p56 = scmp.ne.s32.totalorder %s48, %s51
      %p57 = scmp.eq.s32.totalorder %s15, 0
      %p58 = por %p56, %p57
      %p59 = scmp.ne.s32.totalorder %s48, %s51
      %p60 = scmp.eq.s32.totalorder %s20, 1
      %p61 = por %p59, %p60
      %p62 = scmp.ne.s32.totalorder %s51, %s52
      %p63 = scmp.eq.s32.totalorder %s20, 0
      %p64 = por %p62, %p63
      %p65 = scmp.ne.s32.totalorder %s51, %s52
      %p66 = scmp.eq.s32.totalorder %s21, 1
      %p67 = por %p65, %p66
      %p69 = scmp.ne.s32.totalorder %s52, %s68
      %p70 = scmp.eq.s32.totalorder %s21, 0
      %p71 = por %p69, %p70
      %s72 = ssub.s32 %s23, %s37
      %p73 = scmp.eq.s32.totalorder %s72, 0
      %s75 = sadd.s32 %s74, 1
      %s76 = scalar_select %p73, %s74, %s75
      %p79 = pneg %p73
      %p80 = scmp.eq.s32.totalorder %s15, 1
      %p81 = por %p79, %p80
      %p82 = scmp.ne.s32.totalorder %s74, %s77
      %p83 = scmp.eq.s32.totalorder %s15, 0
      %p84 = por %p82, %p83
      %p85 = scmp.ne.s32.totalorder %s74, %s77
      %p86 = scmp.eq.s32.totalorder %s20, 1
      %p87 = por %p85, %p86
      %p88 = scmp.ne.s32.totalorder %s77, %s78
      %p89 = scmp.eq.s32.totalorder %s20, 0
      %p90 = por %p88, %p89
      %p91 = scmp.ne.s32.totalorder %s77, %s78
      %p92 = scmp.eq.s32.totalorder %s21, 1
      %p93 = por %p91, %p92
      %p95 = scmp.ne.s32.totalorder %s78, %s94
      %p96 = scmp.eq.s32.totalorder %s21, 0
      %p97 = por %p95, %p96
      %s98 = ssub.s32 %s22, %s41
      %s99 = ssub.s32 %s23, %s37
      %s100 = sor.u32 %s98, %s99
      %s101 = ssub.s32 %s24, %s33
      %s102 = sor.u32 %s100, %s101
      %p103 = scmp.eq.s32.totalorder %s102, 0
      %s105 = sadd.s32 %s104, 1
      %s106 = scalar_select %p103, %s104, %s105
      %p109 = pneg %p103
      %p110 = scmp.eq.s32.totalorder %s15, 1
      %p111 = por %p109, %p110
      %p112 = scmp.ne.s32.totalorder %s104, %s107
      %p113 = scmp.eq.s32.totalorder %s15, 0
      %p114 = por %p112, %p113
      %p115 = scmp.ne.s32.totalorder %s104, %s107
      %p116 = scmp.eq.s32.totalorder %s20, 1
      %p117 = por %p115, %p116
      %p118 = scmp.ne.s32.totalorder %s107, %s108
      %p119 = scmp.eq.s32.totalorder %s20, 0
      %p120 = por %p118, %p119
      %p121 = scmp.ne.s32.totalorder %s107, %s108
      %p122 = scmp.eq.s32.totalorder %s21, 1
      %p123 = por %p121, %p122
      %p125 = scmp.ne.s32.totalorder %s108, %s124
      %p126 = scmp.eq.s32.totalorder %s21, 0
      %p127 = por %p125, %p126
      %p128 = scmp.le.s32.totalorder 1, %s15
      %p129 = scmp.lt.s32.totalorder %s15, 3
      %p130 = pnand %p128, %p129
      %p131 = pneg %p130
      // Predicated region
      $region9: #{tpu_custom_call.1} parent=5 // pred_check
        _
      $region10: #{tpu_custom_call.1} parent=5 // pred_check_branch
        %133 = sbr.rel (%p130) target = $region12
      $region11: #{tpu_custom_call.1} parent=5 // pred_region
        %s134 = ssub.s32 %s15, 1
        // Predicated region
        $region13: #{tpu_custom_call.1} parent=11 // pred_check
          %p135 = pneg %p90
        $region14: #{tpu_custom_call.1} parent=11 // pred_check_branch
          %137 = sbr.rel (%p135) target = $region16
        $region15: #{tpu_custom_call.1} parent=11 // pred_region
          %s139 = ssub.s32 128, 128
          %140 = vsyncadd [#allocation6], %s139
          %s141 = smul.addr %s26, 128
          %s142 = scalar_lea.hbm %s1, %s141
          %s144 = sshll.u32 [#allocation5], 4
          %s145 = int_to_ptr.vmem [resolvable:$true] %s144
          %147 = dma.hbm_to_vmem [thread:$0]  %s142, 128, %s145, [#allocation6]
        $region16: #{tpu_custom_call.1} parent=11 // pred_fallthru
          _
      $region12: #{tpu_custom_call.1} parent=5 // pred_fallthru
        _
      %p148 = scmp.lt.s32.totalorder %s15, 2
      // Predicated region
      $region17: #{tpu_custom_call.1} parent=5 // pred_check
        %p149 = pneg %p148
      $region18: #{tpu_custom_call.1} parent=5 // pred_check_branch
        %151 = sbr.rel (%p149) target = $region20
      $region19: #{tpu_custom_call.1} parent=5 // pred_region
        // Predicated region
        $region21: #{tpu_custom_call.1} parent=19 // pred_check
          %p152 = pneg %p58
        $region22: #{tpu_custom_call.1} parent=19 // pred_check_branch
          %154 = sbr.rel (%p152) target = $region24
        $region23: #{tpu_custom_call.1} parent=19 // pred_region
          %s155 = sand.u32 %s48, 1
          %s156 = scalar_lea.sflag [#allocation3], %s155
          %s157 = sand.u32 %s48, 1
          %s158 = smul.addr %s157, 4
          %s159 = scalar_lea.vmem [#allocation2], %s158
          %s161 = ssub.s32 64, 64
          %162 = vsyncadd %s156, %s161
          %s163 = sadd.s32 %s24, %s23
          %s164 = sadd.s32 %s163, %s22
          %s165 = smul.addr %s164, 64
          %s166 = scalar_lea.hbm %s0, %s165
          %s168 = sshll.u32 %s159, 4
          %s169 = int_to_ptr.vmem [resolvable:$true] %s168
          %171 = dma.hbm_to_vmem [thread:$0]  %s166, 64, %s169, %s156
        $region24: #{tpu_custom_call.1} parent=19 // pred_fallthru
          _
      $region20: #{tpu_custom_call.1} parent=5 // pred_fallthru
        _
      %p172 = scmp.le.s32.totalorder 1, %s15
      %p173 = scmp.lt.s32.totalorder %s15, 3
      %p174 = pnand %p172, %p173
      %p175 = pneg %p174
      // Predicated region
      $region25: #{tpu_custom_call.1} parent=5 // pred_check
        _
      $region26: #{tpu_custom_call.1} parent=5 // pred_check_branch
        %177 = sbr.rel (%p174) target = $region28
      $region27: #{tpu_custom_call.1} parent=5 // pred_region
        %s178 = ssub.s32 %s15, 1
        %s179 = sand.u32 %s51, 1
        %s180 = scalar_lea.sflag [#allocation3], %s179
        %s181 = sand.u32 %s51, 1
        %s182 = smul.addr %s181, 4
        %s183 = scalar_lea.vmem [#allocation2], %s182
        // Predicated region
        $region29: #{tpu_custom_call.1} parent=27 // pred_check
          %p184 = pneg %p64
        $region30: #{tpu_custom_call.1} parent=27 // pred_check_branch
          %186 = sbr.rel (%p184) target = $region32
        $region31: #{tpu_custom_call.1} parent=27 // pred_region
          %187 = dma.done %s180, 64
        $region32: #{tpu_custom_call.1} parent=27 // pred_fallthru
          _
        // Predicated region
        $region33: #{tpu_custom_call.1} parent=27 // pred_check
          %p188 = pneg %p90
        $region34: #{tpu_custom_call.1} parent=27 // pred_check_branch
          %190 = sbr.rel (%p188) target = $region36
        $region35: #{tpu_custom_call.1} parent=27 // pred_region
          %191 = dma.done [#allocation6], 128
        $region36: #{tpu_custom_call.1} parent=27 // pred_fallthru
          _
        %s192 = sand.u32 %s51, 1
        %s193 = scalar_lea.sflag [#allocation3], %s192
        %s194 = sand.u32 %s51, 1
        %s195 = smul.addr %s194, 4
        %s196 = scalar_lea.vmem [#allocation2], %s195
        %p197 = pneg %p64
        %p198 = pneg %p61
        %p199 = pneg %p90
        %p200 = pneg %p87
        %p201 = pneg %p120
        %p202 = pneg %p117
        %s203 = sand.u32 %s107, 1
        %s204 = scalar_lea.sflag [#allocation4], %s203
        %s205 = sand.u32 %s107, 1
        %s206 = smul.addr %s205, 8
        %s207 = scalar_lea.vmem [#allocation7], %s206
        %v208 = vld [vmem:[#allocation5] sm:$0xff]
        %v209 = vld [vmem:[%s183] sm:$0xf]
        %vm210 = vcmask 130048
        %v211 = vsel %vm210, %v209, 0.0
        %v212 = vlaneseq
        %v213 = vshrl.u32 %v212, 7
        %v214 = vsub.s32 0, %v213
        %v215 = vlaneseq
        %v216 = vshrl.u32 %v215, 7
        %v217 = vsub.s32 0, %v216
        %v218 = vrot.slane %v211, %v217
        %v219 = vlaneseq
        %v220 = vshrl.u32 %v219, 7
        %v221 = vsub.s32 1, %v220
        %v222 = vlaneseq
        %v223 = vshrl.u32 %v222, 7
        %v224 = vsub.s32 1, %v223
        %v225 = vrot.slane %v211, %v224
        %v226 = vlaneseq
        %v227 = vshrl.u32 %v226, 7
        %v228 = vsub.s32 2, %v227
        %v229 = vlaneseq
        %v230 = vshrl.u32 %v229, 7
        %v231 = vsub.s32 2, %v230
        %v232 = vrot.slane %v211, %v231
        %v233 = vlaneseq
        %v234 = vshrl.u32 %v233, 7
        %v235 = vsub.s32 3, %v234
        %v236 = vlaneseq
        %v237 = vshrl.u32 %v236, 7
        %v238 = vsub.s32 3, %v237
        %v239 = vrot.slane %v211, %v238
        %vm240 = vcmask 1041408
        %v241 = vsel %vm240, 0.0, 0.0
        %v242 = vsel %vm240, %v218, %v225
        %vm243 = vcmask 1043456
        %v244 = vsel %vm243, %v241, 0.0
        %v245 = vsel %vm243, %v242, %v232
        %vm246 = vcmask 1045504
        %v247 = vsel %vm246, %v244, 0.0
        %v248 = vsel %vm246, %v245, %v239
        %249 = vrot.lane.b32.xlu0 %v247, 4
        %v250 = vpop.permute.xlu0 %249
        %251 = vrot.lane.b32.xlu0 %v248, 4
        %v252 = vpop.permute.xlu0 %251
        %v253 = vlaneseq
        %v254 = vand.u32 %v253, 127
        %vm255 = vcmp.lt.s32.totalorder %v254, 4
        %v256 = vsel %vm255, %v250, %v252
        %258 = vset.pattern.permute.xlu0 0
        %259 = vperm.xlu0 %258, %v208
        %v260 = vpop.permute.xlu0 %259
        %v262 = vmul.f32 %v260, %v256
        %263 = vrot.lane.b32.xlu0 %v247, 3
        %v264 = vpop.permute.xlu0 %263
        %265 = vrot.lane.b32.xlu0 %v248, 3
        %v266 = vpop.permute.xlu0 %265
        %vm267 = vcmp.lt.s32.totalorder %v254, 3
        %v268 = vsel %vm267, %v264, %v266
        %269 = vset.pattern.permute.xlu0 1
        %270 = vperm.xlu0 %269, %v208
        %v271 = vpop.permute.xlu0 %270
        %v273 = vmul.f32 %v271, %v268
        %v274 = vadd.f32 %v262, %v273
        %275 = vrot.lane.b32.xlu0 %v247, 2
        %v276 = vpop.permute.xlu0 %275
        %277 = vrot.lane.b32.xlu0 %v248, 2
        %v278 = vpop.permute.xlu0 %277
        %vm279 = vcmp.lt.s32.totalorder %v254, 2
        %v280 = vsel %vm279, %v276, %v278
        %281 = vset.pattern.permute.xlu0 2
        %282 = vperm.xlu0 %281, %v208
        %v283 = vpop.permute.xlu0 %282
        %v285 = vmul.f32 %v283, %v280
        %v286 = vadd.f32 %v274, %v285
        %287 = vrot.lane.b32.xlu0 %v247, 1
        %v288 = vpop.permute.xlu0 %287
        %289 = vrot.lane.b32.xlu0 %v248, 1
        %v290 = vpop.permute.xlu0 %289
        %vm291 = vcmp.lt.s32.totalorder %v254, 1
        %v292 = vsel %vm291, %v288, %v290
        %293 = vset.pattern.permute.xlu0 3
        %294 = vperm.xlu0 %293, %v208
        %v295 = vpop.permute.xlu0 %294
        %v297 = vmul.f32 %v295, %v292
        %v298 = vadd.f32 %v286, %v297
        %299 = vset.pattern.permute.xlu0 4
        %300 = vperm.xlu0 %299, %v208
        %v301 = vpop.permute.xlu0 %300
        %v303 = vmul.f32 %v301, %v248
        %v304 = vadd.f32 %v298, %v303
        %305 = vrot.lane.b32.xlu0 %v248, 127
        %v306 = vpop.permute.xlu0 %305
        %307 = vrot.lane.b32.xlu0 %v247, 127
        %v308 = vpop.permute.xlu0 %307
        %vm309 = vcmp.lt.s32.totalorder %v254, 127
        %v310 = vsel %vm309, %v306, %v308
        %311 = vset.pattern.permute.xlu0 5
        %312 = vperm.xlu0 %311, %v208
        %v313 = vpop.permute.xlu0 %312
        %v315 = vmul.f32 %v313, %v310
        %v316 = vadd.f32 %v304, %v315
        %317 = vrot.lane.b32.xlu0 %v248, 126
        %v318 = vpop.permute.xlu0 %317
        %319 = vrot.lane.b32.xlu0 %v247, 126
        %v320 = vpop.permute.xlu0 %319
        %vm321 = vcmp.lt.s32.totalorder %v254, 126
        %v322 = vsel %vm321, %v318, %v320
        %323 = vset.pattern.permute.xlu0 6
        %324 = vperm.xlu0 %323, %v208
        %v325 = vpop.permute.xlu0 %324
        %v327 = vmul.f32 %v325, %v322
        %v328 = vadd.f32 %v316, %v327
        %329 = vrot.lane.b32.xlu0 %v248, 125
        %v330 = vpop.permute.xlu0 %329
        %331 = vrot.lane.b32.xlu0 %v247, 125
        %v332 = vpop.permute.xlu0 %331
        %vm333 = vcmp.lt.s32.totalorder %v254, 125
        %v334 = vsel %vm333, %v330, %v332
        %335 = vset.pattern.permute.xlu0 7
        %336 = vperm.xlu0 %335, %v208
        %v337 = vpop.permute.xlu0 %336
        %v339 = vmul.f32 %v337, %v334
        %v340 = vadd.f32 %v328, %v339
        %341 = vrot.lane.b32.xlu0 %v248, 124
        %v342 = vpop.permute.xlu0 %341
        %343 = vrot.lane.b32.xlu0 %v247, 124
        %v344 = vpop.permute.xlu0 %343
        %vm345 = vcmp.lt.s32.totalorder %v254, 124
        %v346 = vsel %vm345, %v342, %v344
        %347 = vset.pattern.permute.xlu0 8
        %348 = vperm.xlu0 %347, %v208
        %v349 = vpop.permute.xlu0 %348
        %v351 = vmul.f32 %v349, %v346
        %v352 = vadd.f32 %v340, %v351
        %353 = vst.msk [vmem:[%s207] sm:$0xff] %vm210, %v352
        %s354 = sand.u32 %s107, 1
        %s355 = scalar_lea.sflag [#allocation4], %s354
        %s356 = sand.u32 %s107, 1
        %s357 = smul.addr %s356, 8
        %s358 = scalar_lea.vmem [#allocation7], %s357
        // Predicated region
        $region37: #{tpu_custom_call.1} parent=27 // pred_check
          %p359 = pneg %p117
        $region38: #{tpu_custom_call.1} parent=27 // pred_check_branch
          %361 = sbr.rel (%p359) target = $region40
        $region39: #{tpu_custom_call.1} parent=27 // pred_region
          %s363 = ssub.s32 128, 128
          %364 = vsyncadd %s355, %s363
          %s365 = sadd.s32 %s27, %s26
          %s366 = sadd.s32 %s365, %s25
          %s367 = smul.addr %s366, 128
          %s368 = scalar_lea.hbm %s2, %s367
          %s370 = sshll.u32 %s358, 4
          %s371 = int_to_ptr.vmem [resolvable:$true] %s370
          %373 = dma.vmem_to_hbm [thread:$0]  %s371, 128, %s368, %s355
        $region40: #{tpu_custom_call.1} parent=27 // pred_fallthru
          _
      $region28: #{tpu_custom_call.1} parent=5 // pred_fallthru
        _
      %p374 = scmp.le.s32.totalorder 2, %s15
      // Predicated region
      $region41: #{tpu_custom_call.1} parent=5 // pred_check
        %p375 = pneg %p374
      $region42: #{tpu_custom_call.1} parent=5 // pred_check_branch
        %377 = sbr.rel (%p375) target = $region44
      $region43: #{tpu_custom_call.1} parent=5 // pred_region
        %s378 = ssub.s32 %s15, 2
        // Predicated region
        $region45: #{tpu_custom_call.1} parent=43 // pred_check
          %p379 = pneg %p123
        $region46: #{tpu_custom_call.1} parent=43 // pred_check_branch
          %381 = sbr.rel (%p379) target = $region48
        $region47: #{tpu_custom_call.1} parent=43 // pred_region
          %s382 = sand.u32 %s108, 1
          %s383 = scalar_lea.sflag [#allocation4], %s382
          %s384 = sand.u32 %s108, 1
          %s385 = smul.addr %s384, 8
          %s386 = scalar_lea.vmem [#allocation7], %s385
          %387 = dma.done %s383, 128
        $region48: #{tpu_custom_call.1} parent=43 // pred_fallthru
          _
      $region44: #{tpu_custom_call.1} parent=5 // pred_fallthru
        _
    $region6: #{tpu_custom_call.1} parent=1 // loop_footer
      %s19 = sadd.s32 1, %s15
    $region7: #{tpu_custom_call.1} parent=1 // loop_footer_branch
      %14 = sbr.rel target = $region3
    $region8: #{tpu_custom_call.1} parent=1 // loop_exit
      _
    %388 = vsyncpa [#allocation3], 1
    %s389 = scalar_lea.sflag [#allocation3], 1
    %390 = vsyncpa %s389, 1
    %391 = vsyncpa [#allocation6], 1
    %392 = vsyncpa [#allocation4], 1
    %s393 = scalar_lea.sflag [#allocation4], 1
    %394 = vsyncpa %s393, 1

</llo_original>
